<compile_context>
chip_gen: v7x
topology: tpu7x:2x2x1
jax: 0.10.0
libtpu: 0.0.40
codegen_flags: <defaults>
</compile_context>

<pallas_src>
import jax
import jax.numpy as jnp
from jax.experimental import pallas as pl
from jax.experimental.pallas import tpu as pltpu

IN_F = 2      # input features
HIDDEN = 10   # hidden units
OUT_F = 4     # output features

LANES = 256   # lane extent of one compute chunk (multiple of 128)
SUB = 8       # sublane extent of one compute chunk
MAX_RB = 64   # sublane-rows per grid block -> up to 64*256 = 16384 rows/step


def _round_up(a, b):
    return (a + b - 1) // b * b


def _mlp_kernel(w1_ref, b1_ref, w2_ref, b2_ref, x_ref, o_ref):
    """One grid step: x_ref [2, RB, LANES] -> o_ref [4, RB, LANES].

    w1_ref/b1_ref/w2_ref/b2_ref are flat f32 SMEM refs ([20], [10], [40], [4]).
    The batch lives on the (RB, LANES) axes, so all VPU ops run on dense vregs.
    """
    rb = x_ref.shape[1]

    # Hoist all scalar parameter reads (cheap SMEM loads) out of the hot loop.
    w1 = [[w1_ref[k * HIDDEN + j] for j in range(HIDDEN)] for k in range(IN_F)]
    b1 = [b1_ref[j] for j in range(HIDDEN)]
    w2 = [[w2_ref[j * OUT_F + i] for i in range(OUT_F)] for j in range(HIDDEN)]
    b2 = [b2_ref[i] for i in range(OUT_F)]

    # Static unroll over (8, LANES) sublane chunks keeps vreg pressure low
    # (~30 live vregs per chunk) while the BlockSpec tile stays large.
    for r in range(rb // SUB):
        sl = slice(r * SUB, (r + 1) * SUB)
        x0 = x_ref[0, sl, :]            # [SUB, LANES]
        x1 = x_ref[1, sl, :]            # [SUB, LANES]

        # Layer 1 + ReLU:  h_j = relu(w1[0,j]*x0 + w1[1,j]*x1 + b1[j])
        h = [
            jnp.maximum(w1[0][j] * x0 + w1[1][j] * x1 + b1[j], 0.0)
            for j in range(HIDDEN)
        ]

        # Layer 2:  y_i = sum_j h_j * w2[j,i] + b2[i]
        for i in range(OUT_F):
            acc = h[0] * w2[0][i] + b2[i]
            for j in range(1, HIDDEN):
                acc = acc + h[j] * w2[j][i]
            o_ref[i, sl, :] = acc       # full (8, LANES) unmasked store


def generative_model_forward(x, w1, b1, w2, b2):
    """x: [N, 2] float32 -> [N, 4] float32 (same math as the PyTorch module)."""
    assert x.ndim == 2 and x.shape[1] == IN_F
    n = x.shape[0]

    # Choose the batch tile: up to MAX_RB*LANES rows per grid step, padded so
    # the grid divides evenly (padded rows are computed then sliced off).
    g_needed = -(-n // LANES)
    rb = min(MAX_RB, _round_up(max(g_needed, 1), SUB))
    block_rows = rb * LANES
    n_pad = _round_up(n, block_rows)
    grid_n = n_pad // block_rows

    x_pad = x if n_pad == n else jnp.pad(x, ((0, n_pad - n), (0, 0)))
    # Lane/sublane-dense layout: [features, batch] with batch split as (g, c).
    xt = x_pad.T.reshape(IN_F, n_pad // LANES, LANES)

    out_t = pl.pallas_call(
        _mlp_kernel,
        out_shape=jax.ShapeDtypeStruct(
            (OUT_F, n_pad // LANES, LANES), jnp.float32
        ),
        grid=(grid_n,),
        in_specs=[
            # Parameters: tiny & grid-invariant -> resident in SMEM, no
            # per-step DMA traffic for them.
            pl.BlockSpec(memory_space=pltpu.MemorySpace.SMEM),  # w1 flat [20]
            pl.BlockSpec(memory_space=pltpu.MemorySpace.SMEM),  # b1      [10]
            pl.BlockSpec(memory_space=pltpu.MemorySpace.SMEM),  # w2 flat [40]
            pl.BlockSpec(memory_space=pltpu.MemorySpace.SMEM),  # b2      [4]
            # Activations: tiled over the batch, auto double-buffered.
            pl.BlockSpec((IN_F, rb, LANES), lambda i: (0, i, 0)),
        ],
        out_specs=pl.BlockSpec((OUT_F, rb, LANES), lambda i: (0, i, 0)),
        compiler_params=pltpu.CompilerParams(
            # Batch tiles are independent -> shard across TensorCores on v7x.
            dimension_semantics=("parallel",),
        ),
    )(w1.reshape(-1), b1, w2.reshape(-1), b2, xt)

    # Undo the layout transform.  Callers that can keep the [features, batch]
    # layout end-to-end should skip these wrapper transposes entirely.
    return out_t.reshape(OUT_F, n_pad).T[:n, :]


def init_params(key):
    """Deterministic init matching nn.Linear shapes: (2->10), (10->4).

    Mimics PyTorch's default U(-1/sqrt(fan_in), 1/sqrt(fan_in)) init; weights
    stored as [in, out] (transpose of torch's [out, in]).
    """
    k1, k2, k3, k4 = jax.random.split(key, 4)
    bound1 = 1.0 / jnp.sqrt(2.0)
    bound2 = 1.0 / jnp.sqrt(10.0)
    w1 = jax.random.uniform(k1, (IN_F, HIDDEN), jnp.float32, -bound1, bound1)
    b1 = jax.random.uniform(k2, (HIDDEN,), jnp.float32, -bound1, bound1)
    w2 = jax.random.uniform(k3, (HIDDEN, OUT_F), jnp.float32, -bound2, bound2)
    b2 = jax.random.uniform(k4, (OUT_F,), jnp.float32, -bound2, bound2)
    return w1, b1, w2, b2


if __name__ == "__main__":
    key = jax.random.PRNGKey(0)
    kx, kp = jax.random.split(key)
    w1, b1, w2, b2 = init_params(kp)

    def ref_forward(xx):
        return jnp.maximum(xx @ w1 + b1, 0.0) @ w2 + b2

    # Small shape consistent with the module (Linear(2,10)->ReLU->Linear(10,4)).
    x_small = jax.random.normal(kx, (8, IN_F), jnp.float32)
    out_small = jax.block_until_ready(
        generative_model_forward(x_small, w1, b1, w2, b2)
    )
    assert out_small.shape == (8, OUT_F)
    assert jnp.allclose(out_small, ref_forward(x_small), atol=1e-5, rtol=1e-5)

    # Larger, non-tile-aligned batch to exercise the multi-step pipeline,
    # padding, and the "parallel" grid axis.
    x_big = jax.random.normal(kx, (40000, IN_F), jnp.float32)
    out_big = jax.block_until_ready(
        generative_model_forward(x_big, w1, b1, w2, b2)
    )
    assert out_big.shape == (40000, OUT_F)
    assert jnp.allclose(out_big, ref_forward(x_big), atol=1e-5, rtol=1e-5)

    print("KERNEL_OK")
</pallas_src>

<mosaic_0001>
module attributes {stable_mosaic.version = 11 : i64} {
  func.func @_mlp_kernel(%arg0: i32, %arg1: memref<20xf32, #tpu.memory_space<smem>>, %arg2: memref<10xf32, #tpu.memory_space<smem>>, %arg3: memref<40xf32, #tpu.memory_space<smem>>, %arg4: memref<4xf32, #tpu.memory_space<smem>>, %arg5: memref<2x8x256xf32, #tpu.memory_space<vmem>>, %arg6: memref<4x8x256xf32, #tpu.memory_space<vmem>>) attributes {dimension_semantics = [#tpu.dimension_semantics<parallel>], iteration_bounds = array<i64: 1>, scalar_prefetch = 0 : i64, scratch_operands = 0 : i64, tpu.core_type = #tpu.core_type<tc>, window_params = [{transform_indices = @transform_0, window_bounds = array<i64: 20>}, {transform_indices = @transform_1, window_bounds = array<i64: 10>}, {transform_indices = @transform_2, window_bounds = array<i64: 40>}, {transform_indices = @transform_3, window_bounds = array<i64: 4>}, {transform_indices = @transform_4, window_bounds = array<i64: 2, 8, 256>}, {transform_indices = @transform_5, window_bounds = array<i64: 4, 8, 256>}]} {
    %c0 = arith.constant 0 : index
    %0 = memref.load %arg1[%c0] : memref<20xf32, #tpu.memory_space<smem>>
    %c1 = arith.constant 1 : index
    %1 = memref.load %arg1[%c1] : memref<20xf32, #tpu.memory_space<smem>>
    %c2 = arith.constant 2 : index
    %2 = memref.load %arg1[%c2] : memref<20xf32, #tpu.memory_space<smem>>
    %c3 = arith.constant 3 : index
    %3 = memref.load %arg1[%c3] : memref<20xf32, #tpu.memory_space<smem>>
    %c4 = arith.constant 4 : index
    %4 = memref.load %arg1[%c4] : memref<20xf32, #tpu.memory_space<smem>>
    %c5 = arith.constant 5 : index
    %5 = memref.load %arg1[%c5] : memref<20xf32, #tpu.memory_space<smem>>
    %c6 = arith.constant 6 : index
    %6 = memref.load %arg1[%c6] : memref<20xf32, #tpu.memory_space<smem>>
    %c7 = arith.constant 7 : index
    %7 = memref.load %arg1[%c7] : memref<20xf32, #tpu.memory_space<smem>>
    %c8 = arith.constant 8 : index
    %8 = memref.load %arg1[%c8] : memref<20xf32, #tpu.memory_space<smem>>
    %c9 = arith.constant 9 : index
    %9 = memref.load %arg1[%c9] : memref<20xf32, #tpu.memory_space<smem>>
    %c10 = arith.constant 10 : index
    %10 = memref.load %arg1[%c10] : memref<20xf32, #tpu.memory_space<smem>>
    %c11 = arith.constant 11 : index
    %11 = memref.load %arg1[%c11] : memref<20xf32, #tpu.memory_space<smem>>
    %c12 = arith.constant 12 : index
    %12 = memref.load %arg1[%c12] : memref<20xf32, #tpu.memory_space<smem>>
    %c13 = arith.constant 13 : index
    %13 = memref.load %arg1[%c13] : memref<20xf32, #tpu.memory_space<smem>>
    %c14 = arith.constant 14 : index
    %14 = memref.load %arg1[%c14] : memref<20xf32, #tpu.memory_space<smem>>
    %c15 = arith.constant 15 : index
    %15 = memref.load %arg1[%c15] : memref<20xf32, #tpu.memory_space<smem>>
    %c16 = arith.constant 16 : index
    %16 = memref.load %arg1[%c16] : memref<20xf32, #tpu.memory_space<smem>>
    %c17 = arith.constant 17 : index
    %17 = memref.load %arg1[%c17] : memref<20xf32, #tpu.memory_space<smem>>
    %c18 = arith.constant 18 : index
    %18 = memref.load %arg1[%c18] : memref<20xf32, #tpu.memory_space<smem>>
    %c19 = arith.constant 19 : index
    %19 = memref.load %arg1[%c19] : memref<20xf32, #tpu.memory_space<smem>>
    %c0_0 = arith.constant 0 : index
    %20 = memref.load %arg2[%c0_0] : memref<10xf32, #tpu.memory_space<smem>>
    %c1_1 = arith.constant 1 : index
    %21 = memref.load %arg2[%c1_1] : memref<10xf32, #tpu.memory_space<smem>>
    %c2_2 = arith.constant 2 : index
    %22 = memref.load %arg2[%c2_2] : memref<10xf32, #tpu.memory_space<smem>>
    %c3_3 = arith.constant 3 : index
    %23 = memref.load %arg2[%c3_3] : memref<10xf32, #tpu.memory_space<smem>>
    %c4_4 = arith.constant 4 : index
    %24 = memref.load %arg2[%c4_4] : memref<10xf32, #tpu.memory_space<smem>>
    %c5_5 = arith.constant 5 : index
    %25 = memref.load %arg2[%c5_5] : memref<10xf32, #tpu.memory_space<smem>>
    %c6_6 = arith.constant 6 : index
    %26 = memref.load %arg2[%c6_6] : memref<10xf32, #tpu.memory_space<smem>>
    %c7_7 = arith.constant 7 : index
    %27 = memref.load %arg2[%c7_7] : memref<10xf32, #tpu.memory_space<smem>>
    %c8_8 = arith.constant 8 : index
    %28 = memref.load %arg2[%c8_8] : memref<10xf32, #tpu.memory_space<smem>>
    %c9_9 = arith.constant 9 : index
    %29 = memref.load %arg2[%c9_9] : memref<10xf32, #tpu.memory_space<smem>>
    %c0_10 = arith.constant 0 : index
    %30 = memref.load %arg3[%c0_10] : memref<40xf32, #tpu.memory_space<smem>>
    %c1_11 = arith.constant 1 : index
    %31 = memref.load %arg3[%c1_11] : memref<40xf32, #tpu.memory_space<smem>>
    %c2_12 = arith.constant 2 : index
    %32 = memref.load %arg3[%c2_12] : memref<40xf32, #tpu.memory_space<smem>>
    %c3_13 = arith.constant 3 : index
    %33 = memref.load %arg3[%c3_13] : memref<40xf32, #tpu.memory_space<smem>>
    %c4_14 = arith.constant 4 : index
    %34 = memref.load %arg3[%c4_14] : memref<40xf32, #tpu.memory_space<smem>>
    %c5_15 = arith.constant 5 : index
    %35 = memref.load %arg3[%c5_15] : memref<40xf32, #tpu.memory_space<smem>>
    %c6_16 = arith.constant 6 : index
    %36 = memref.load %arg3[%c6_16] : memref<40xf32, #tpu.memory_space<smem>>
    %c7_17 = arith.constant 7 : index
    %37 = memref.load %arg3[%c7_17] : memref<40xf32, #tpu.memory_space<smem>>
    %c8_18 = arith.constant 8 : index
    %38 = memref.load %arg3[%c8_18] : memref<40xf32, #tpu.memory_space<smem>>
    %c9_19 = arith.constant 9 : index
    %39 = memref.load %arg3[%c9_19] : memref<40xf32, #tpu.memory_space<smem>>
    %c10_20 = arith.constant 10 : index
    %40 = memref.load %arg3[%c10_20] : memref<40xf32, #tpu.memory_space<smem>>
    %c11_21 = arith.constant 11 : index
    %41 = memref.load %arg3[%c11_21] : memref<40xf32, #tpu.memory_space<smem>>
    %c12_22 = arith.constant 12 : index
    %42 = memref.load %arg3[%c12_22] : memref<40xf32, #tpu.memory_space<smem>>
    %c13_23 = arith.constant 13 : index
    %43 = memref.load %arg3[%c13_23] : memref<40xf32, #tpu.memory_space<smem>>
    %c14_24 = arith.constant 14 : index
    %44 = memref.load %arg3[%c14_24] : memref<40xf32, #tpu.memory_space<smem>>
    %c15_25 = arith.constant 15 : index
    %45 = memref.load %arg3[%c15_25] : memref<40xf32, #tpu.memory_space<smem>>
    %c16_26 = arith.constant 16 : index
    %46 = memref.load %arg3[%c16_26] : memref<40xf32, #tpu.memory_space<smem>>
    %c17_27 = arith.constant 17 : index
    %47 = memref.load %arg3[%c17_27] : memref<40xf32, #tpu.memory_space<smem>>
    %c18_28 = arith.constant 18 : index
    %48 = memref.load %arg3[%c18_28] : memref<40xf32, #tpu.memory_space<smem>>
    %c19_29 = arith.constant 19 : index
    %49 = memref.load %arg3[%c19_29] : memref<40xf32, #tpu.memory_space<smem>>
    %c20 = arith.constant 20 : index
    %50 = memref.load %arg3[%c20] : memref<40xf32, #tpu.memory_space<smem>>
    %c21 = arith.constant 21 : index
    %51 = memref.load %arg3[%c21] : memref<40xf32, #tpu.memory_space<smem>>
    %c22 = arith.constant 22 : index
    %52 = memref.load %arg3[%c22] : memref<40xf32, #tpu.memory_space<smem>>
    %c23 = arith.constant 23 : index
    %53 = memref.load %arg3[%c23] : memref<40xf32, #tpu.memory_space<smem>>
    %c24 = arith.constant 24 : index
    %54 = memref.load %arg3[%c24] : memref<40xf32, #tpu.memory_space<smem>>
    %c25 = arith.constant 25 : index
    %55 = memref.load %arg3[%c25] : memref<40xf32, #tpu.memory_space<smem>>
    %c26 = arith.constant 26 : index
    %56 = memref.load %arg3[%c26] : memref<40xf32, #tpu.memory_space<smem>>
    %c27 = arith.constant 27 : index
    %57 = memref.load %arg3[%c27] : memref<40xf32, #tpu.memory_space<smem>>
    %c28 = arith.constant 28 : index
    %58 = memref.load %arg3[%c28] : memref<40xf32, #tpu.memory_space<smem>>
    %c29 = arith.constant 29 : index
    %59 = memref.load %arg3[%c29] : memref<40xf32, #tpu.memory_space<smem>>
    %c30 = arith.constant 30 : index
    %60 = memref.load %arg3[%c30] : memref<40xf32, #tpu.memory_space<smem>>
    %c31 = arith.constant 31 : index
    %61 = memref.load %arg3[%c31] : memref<40xf32, #tpu.memory_space<smem>>
    %c32 = arith.constant 32 : index
    %62 = memref.load %arg3[%c32] : memref<40xf32, #tpu.memory_space<smem>>
    %c33 = arith.constant 33 : index
    %63 = memref.load %arg3[%c33] : memref<40xf32, #tpu.memory_space<smem>>
    %c34 = arith.constant 34 : index
    %64 = memref.load %arg3[%c34] : memref<40xf32, #tpu.memory_space<smem>>
    %c35 = arith.constant 35 : index
    %65 = memref.load %arg3[%c35] : memref<40xf32, #tpu.memory_space<smem>>
    %c36 = arith.constant 36 : index
    %66 = memref.load %arg3[%c36] : memref<40xf32, #tpu.memory_space<smem>>
    %c37 = arith.constant 37 : index
    %67 = memref.load %arg3[%c37] : memref<40xf32, #tpu.memory_space<smem>>
    %c38 = arith.constant 38 : index
    %68 = memref.load %arg3[%c38] : memref<40xf32, #tpu.memory_space<smem>>
    %c39 = arith.constant 39 : index
    %69 = memref.load %arg3[%c39] : memref<40xf32, #tpu.memory_space<smem>>
    %c0_30 = arith.constant 0 : index
    %70 = memref.load %arg4[%c0_30] : memref<4xf32, #tpu.memory_space<smem>>
    %c1_31 = arith.constant 1 : index
    %71 = memref.load %arg4[%c1_31] : memref<4xf32, #tpu.memory_space<smem>>
    %c2_32 = arith.constant 2 : index
    %72 = memref.load %arg4[%c2_32] : memref<4xf32, #tpu.memory_space<smem>>
    %c3_33 = arith.constant 3 : index
    %73 = memref.load %arg4[%c3_33] : memref<4xf32, #tpu.memory_space<smem>>
    %c0_34 = arith.constant 0 : index
    %c0_35 = arith.constant 0 : index
    %c0_36 = arith.constant 0 : index
    %74 = vector.load %arg5[%c0_34, %c0_35, %c0_36] : memref<2x8x256xf32, #tpu.memory_space<vmem>>, vector<1x8x256xf32>
    %75 = vector.shape_cast %74 : vector<1x8x256xf32> to vector<8x256xf32>
    %c1_37 = arith.constant 1 : index
    %c0_38 = arith.constant 0 : index
    %c0_39 = arith.constant 0 : index
    %76 = vector.load %arg5[%c1_37, %c0_38, %c0_39] : memref<2x8x256xf32, #tpu.memory_space<vmem>>, vector<1x8x256xf32>
    %77 = vector.shape_cast %76 : vector<1x8x256xf32> to vector<8x256xf32>
    %78 = vector.broadcast %0 : f32 to vector<8x256xf32>
    %79 = arith.mulf %78, %75 : vector<8x256xf32>
    %80 = vector.broadcast %10 : f32 to vector<8x256xf32>
    %81 = arith.mulf %80, %77 : vector<8x256xf32>
    %82 = arith.addf %79, %81 : vector<8x256xf32>
    %83 = vector.broadcast %20 : f32 to vector<8x256xf32>
    %84 = arith.addf %82, %83 : vector<8x256xf32>
    %cst = arith.constant 0.000000e+00 : f32
    %85 = vector.broadcast %cst : f32 to vector<8x256xf32>
    %86 = arith.maximumf %84, %85 : vector<8x256xf32>
    %87 = vector.broadcast %1 : f32 to vector<8x256xf32>
    %88 = arith.mulf %87, %75 : vector<8x256xf32>
    %89 = vector.broadcast %11 : f32 to vector<8x256xf32>
    %90 = arith.mulf %89, %77 : vector<8x256xf32>
    %91 = arith.addf %88, %90 : vector<8x256xf32>
    %92 = vector.broadcast %21 : f32 to vector<8x256xf32>
    %93 = arith.addf %91, %92 : vector<8x256xf32>
    %cst_40 = arith.constant 0.000000e+00 : f32
    %94 = vector.broadcast %cst_40 : f32 to vector<8x256xf32>
    %95 = arith.maximumf %93, %94 : vector<8x256xf32>
    %96 = vector.broadcast %2 : f32 to vector<8x256xf32>
    %97 = arith.mulf %96, %75 : vector<8x256xf32>
    %98 = vector.broadcast %12 : f32 to vector<8x256xf32>
    %99 = arith.mulf %98, %77 : vector<8x256xf32>
    %100 = arith.addf %97, %99 : vector<8x256xf32>
    %101 = vector.broadcast %22 : f32 to vector<8x256xf32>
    %102 = arith.addf %100, %101 : vector<8x256xf32>
    %cst_41 = arith.constant 0.000000e+00 : f32
    %103 = vector.broadcast %cst_41 : f32 to vector<8x256xf32>
    %104 = arith.maximumf %102, %103 : vector<8x256xf32>
    %105 = vector.broadcast %3 : f32 to vector<8x256xf32>
    %106 = arith.mulf %105, %75 : vector<8x256xf32>
    %107 = vector.broadcast %13 : f32 to vector<8x256xf32>
    %108 = arith.mulf %107, %77 : vector<8x256xf32>
    %109 = arith.addf %106, %108 : vector<8x256xf32>
    %110 = vector.broadcast %23 : f32 to vector<8x256xf32>
    %111 = arith.addf %109, %110 : vector<8x256xf32>
    %cst_42 = arith.constant 0.000000e+00 : f32
    %112 = vector.broadcast %cst_42 : f32 to vector<8x256xf32>
    %113 = arith.maximumf %111, %112 : vector<8x256xf32>
    %114 = vector.broadcast %4 : f32 to vector<8x256xf32>
    %115 = arith.mulf %114, %75 : vector<8x256xf32>
    %116 = vector.broadcast %14 : f32 to vector<8x256xf32>
    %117 = arith.mulf %116, %77 : vector<8x256xf32>
    %118 = arith.addf %115, %117 : vector<8x256xf32>
    %119 = vector.broadcast %24 : f32 to vector<8x256xf32>
    %120 = arith.addf %118, %119 : vector<8x256xf32>
    %cst_43 = arith.constant 0.000000e+00 : f32
    %121 = vector.broadcast %cst_43 : f32 to vector<8x256xf32>
    %122 = arith.maximumf %120, %121 : vector<8x256xf32>
    %123 = vector.broadcast %5 : f32 to vector<8x256xf32>
    %124 = arith.mulf %123, %75 : vector<8x256xf32>
    %125 = vector.broadcast %15 : f32 to vector<8x256xf32>
    %126 = arith.mulf %125, %77 : vector<8x256xf32>
    %127 = arith.addf %124, %126 : vector<8x256xf32>
    %128 = vector.broadcast %25 : f32 to vector<8x256xf32>
    %129 = arith.addf %127, %128 : vector<8x256xf32>
    %cst_44 = arith.constant 0.000000e+00 : f32
    %130 = vector.broadcast %cst_44 : f32 to vector<8x256xf32>
    %131 = arith.maximumf %129, %130 : vector<8x256xf32>
    %132 = vector.broadcast %6 : f32 to vector<8x256xf32>
    %133 = arith.mulf %132, %75 : vector<8x256xf32>
    %134 = vector.broadcast %16 : f32 to vector<8x256xf32>
    %135 = arith.mulf %134, %77 : vector<8x256xf32>
    %136 = arith.addf %133, %135 : vector<8x256xf32>
    %137 = vector.broadcast %26 : f32 to vector<8x256xf32>
    %138 = arith.addf %136, %137 : vector<8x256xf32>
    %cst_45 = arith.constant 0.000000e+00 : f32
    %139 = vector.broadcast %cst_45 : f32 to vector<8x256xf32>
    %140 = arith.maximumf %138, %139 : vector<8x256xf32>
    %141 = vector.broadcast %7 : f32 to vector<8x256xf32>
    %142 = arith.mulf %141, %75 : vector<8x256xf32>
    %143 = vector.broadcast %17 : f32 to vector<8x256xf32>
    %144 = arith.mulf %143, %77 : vector<8x256xf32>
    %145 = arith.addf %142, %144 : vector<8x256xf32>
    %146 = vector.broadcast %27 : f32 to vector<8x256xf32>
    %147 = arith.addf %145, %146 : vector<8x256xf32>
    %cst_46 = arith.constant 0.000000e+00 : f32
    %148 = vector.broadcast %cst_46 : f32 to vector<8x256xf32>
    %149 = arith.maximumf %147, %148 : vector<8x256xf32>
    %150 = vector.broadcast %8 : f32 to vector<8x256xf32>
    %151 = arith.mulf %150, %75 : vector<8x256xf32>
    %152 = vector.broadcast %18 : f32 to vector<8x256xf32>
    %153 = arith.mulf %152, %77 : vector<8x256xf32>
    %154 = arith.addf %151, %153 : vector<8x256xf32>
    %155 = vector.broadcast %28 : f32 to vector<8x256xf32>
    %156 = arith.addf %154, %155 : vector<8x256xf32>
    %cst_47 = arith.constant 0.000000e+00 : f32
    %157 = vector.broadcast %cst_47 : f32 to vector<8x256xf32>
    %158 = arith.maximumf %156, %157 : vector<8x256xf32>
    %159 = vector.broadcast %9 : f32 to vector<8x256xf32>
    %160 = arith.mulf %159, %75 : vector<8x256xf32>
    %161 = vector.broadcast %19 : f32 to vector<8x256xf32>
    %162 = arith.mulf %161, %77 : vector<8x256xf32>
    %163 = arith.addf %160, %162 : vector<8x256xf32>
    %164 = vector.broadcast %29 : f32 to vector<8x256xf32>
    %165 = arith.addf %163, %164 : vector<8x256xf32>
    %cst_48 = arith.constant 0.000000e+00 : f32
    %166 = vector.broadcast %cst_48 : f32 to vector<8x256xf32>
    %167 = arith.maximumf %165, %166 : vector<8x256xf32>
    %168 = vector.broadcast %30 : f32 to vector<8x256xf32>
    %169 = arith.mulf %86, %168 : vector<8x256xf32>
    %170 = vector.broadcast %70 : f32 to vector<8x256xf32>
    %171 = arith.addf %169, %170 : vector<8x256xf32>
    %172 = vector.broadcast %34 : f32 to vector<8x256xf32>
    %173 = arith.mulf %95, %172 : vector<8x256xf32>
    %174 = arith.addf %171, %173 : vector<8x256xf32>
    %175 = vector.broadcast %38 : f32 to vector<8x256xf32>
    %176 = arith.mulf %104, %175 : vector<8x256xf32>
    %177 = arith.addf %174, %176 : vector<8x256xf32>
    %178 = vector.broadcast %42 : f32 to vector<8x256xf32>
    %179 = arith.mulf %113, %178 : vector<8x256xf32>
    %180 = arith.addf %177, %179 : vector<8x256xf32>
    %181 = vector.broadcast %46 : f32 to vector<8x256xf32>
    %182 = arith.mulf %122, %181 : vector<8x256xf32>
    %183 = arith.addf %180, %182 : vector<8x256xf32>
    %184 = vector.broadcast %50 : f32 to vector<8x256xf32>
    %185 = arith.mulf %131, %184 : vector<8x256xf32>
    %186 = arith.addf %183, %185 : vector<8x256xf32>
    %187 = vector.broadcast %54 : f32 to vector<8x256xf32>
    %188 = arith.mulf %140, %187 : vector<8x256xf32>
    %189 = arith.addf %186, %188 : vector<8x256xf32>
    %190 = vector.broadcast %58 : f32 to vector<8x256xf32>
    %191 = arith.mulf %149, %190 : vector<8x256xf32>
    %192 = arith.addf %189, %191 : vector<8x256xf32>
    %193 = vector.broadcast %62 : f32 to vector<8x256xf32>
    %194 = arith.mulf %158, %193 : vector<8x256xf32>
    %195 = arith.addf %192, %194 : vector<8x256xf32>
    %196 = vector.broadcast %66 : f32 to vector<8x256xf32>
    %197 = arith.mulf %167, %196 : vector<8x256xf32>
    %198 = arith.addf %195, %197 : vector<8x256xf32>
    %c0_49 = arith.constant 0 : index
    %c0_50 = arith.constant 0 : index
    %c0_51 = arith.constant 0 : index
    %199 = vector.load %arg6[%c0_49, %c0_50, %c0_51] : memref<4x8x256xf32, #tpu.memory_space<vmem>>, vector<1x8x256xf32>
    %200 = vector.shape_cast %199 : vector<1x8x256xf32> to vector<8x256xf32>
    %201 = vector.shape_cast %198 : vector<8x256xf32> to vector<1x8x256xf32>
    tpu.vector_store %arg6[%c0_49, %c0_50, %c0_51], %201 {strides = array<i32>} : memref<4x8x256xf32, #tpu.memory_space<vmem>>, vector<1x8x256xf32>,
    %202 = vector.broadcast %31 : f32 to vector<8x256xf32>
    %203 = arith.mulf %86, %202 : vector<8x256xf32>
    %204 = vector.broadcast %71 : f32 to vector<8x256xf32>
    %205 = arith.addf %203, %204 : vector<8x256xf32>
    %206 = vector.broadcast %35 : f32 to vector<8x256xf32>
    %207 = arith.mulf %95, %206 : vector<8x256xf32>
    %208 = arith.addf %205, %207 : vector<8x256xf32>
    %209 = vector.broadcast %39 : f32 to vector<8x256xf32>
    %210 = arith.mulf %104, %209 : vector<8x256xf32>
    %211 = arith.addf %208, %210 : vector<8x256xf32>
    %212 = vector.broadcast %43 : f32 to vector<8x256xf32>
    %213 = arith.mulf %113, %212 : vector<8x256xf32>
    %214 = arith.addf %211, %213 : vector<8x256xf32>
    %215 = vector.broadcast %47 : f32 to vector<8x256xf32>
    %216 = arith.mulf %122, %215 : vector<8x256xf32>
    %217 = arith.addf %214, %216 : vector<8x256xf32>
    %218 = vector.broadcast %51 : f32 to vector<8x256xf32>
    %219 = arith.mulf %131, %218 : vector<8x256xf32>
    %220 = arith.addf %217, %219 : vector<8x256xf32>
    %221 = vector.broadcast %55 : f32 to vector<8x256xf32>
    %222 = arith.mulf %140, %221 : vector<8x256xf32>
    %223 = arith.addf %220, %222 : vector<8x256xf32>
    %224 = vector.broadcast %59 : f32 to vector<8x256xf32>
    %225 = arith.mulf %149, %224 : vector<8x256xf32>
    %226 = arith.addf %223, %225 : vector<8x256xf32>
    %227 = vector.broadcast %63 : f32 to vector<8x256xf32>
    %228 = arith.mulf %158, %227 : vector<8x256xf32>
    %229 = arith.addf %226, %228 : vector<8x256xf32>
    %230 = vector.broadcast %67 : f32 to vector<8x256xf32>
    %231 = arith.mulf %167, %230 : vector<8x256xf32>
    %232 = arith.addf %229, %231 : vector<8x256xf32>
    %c1_52 = arith.constant 1 : index
    %c0_53 = arith.constant 0 : index
    %c0_54 = arith.constant 0 : index
    %233 = vector.load %arg6[%c1_52, %c0_53, %c0_54] : memref<4x8x256xf32, #tpu.memory_space<vmem>>, vector<1x8x256xf32>
    %234 = vector.shape_cast %233 : vector<1x8x256xf32> to vector<8x256xf32>
    %235 = vector.shape_cast %232 : vector<8x256xf32> to vector<1x8x256xf32>
    tpu.vector_store %arg6[%c1_52, %c0_53, %c0_54], %235 {strides = array<i32>} : memref<4x8x256xf32, #tpu.memory_space<vmem>>, vector<1x8x256xf32>,
    %236 = vector.broadcast %32 : f32 to vector<8x256xf32>
    %237 = arith.mulf %86, %236 : vector<8x256xf32>
    %238 = vector.broadcast %72 : f32 to vector<8x256xf32>
    %239 = arith.addf %237, %238 : vector<8x256xf32>
    %240 = vector.broadcast %36 : f32 to vector<8x256xf32>
    %241 = arith.mulf %95, %240 : vector<8x256xf32>
    %242 = arith.addf %239, %241 : vector<8x256xf32>
    %243 = vector.broadcast %40 : f32 to vector<8x256xf32>
    %244 = arith.mulf %104, %243 : vector<8x256xf32>
    %245 = arith.addf %242, %244 : vector<8x256xf32>
    %246 = vector.broadcast %44 : f32 to vector<8x256xf32>
    %247 = arith.mulf %113, %246 : vector<8x256xf32>
    %248 = arith.addf %245, %247 : vector<8x256xf32>
    %249 = vector.broadcast %48 : f32 to vector<8x256xf32>
    %250 = arith.mulf %122, %249 : vector<8x256xf32>
    %251 = arith.addf %248, %250 : vector<8x256xf32>
    %252 = vector.broadcast %52 : f32 to vector<8x256xf32>
    %253 = arith.mulf %131, %252 : vector<8x256xf32>
    %254 = arith.addf %251, %253 : vector<8x256xf32>
    %255 = vector.broadcast %56 : f32 to vector<8x256xf32>
    %256 = arith.mulf %140, %255 : vector<8x256xf32>
    %257 = arith.addf %254, %256 : vector<8x256xf32>
    %258 = vector.broadcast %60 : f32 to vector<8x256xf32>
    %259 = arith.mulf %149, %258 : vector<8x256xf32>
    %260 = arith.addf %257, %259 : vector<8x256xf32>
    %261 = vector.broadcast %64 : f32 to vector<8x256xf32>
    %262 = arith.mulf %158, %261 : vector<8x256xf32>
    %263 = arith.addf %260, %262 : vector<8x256xf32>
    %264 = vector.broadcast %68 : f32 to vector<8x256xf32>
    %265 = arith.mulf %167, %264 : vector<8x256xf32>
    %266 = arith.addf %263, %265 : vector<8x256xf32>
    %c2_55 = arith.constant 2 : index
    %c0_56 = arith.constant 0 : index
    %c0_57 = arith.constant 0 : index
    %267 = vector.load %arg6[%c2_55, %c0_56, %c0_57] : memref<4x8x256xf32, #tpu.memory_space<vmem>>, vector<1x8x256xf32>
    %268 = vector.shape_cast %267 : vector<1x8x256xf32> to vector<8x256xf32>
    %269 = vector.shape_cast %266 : vector<8x256xf32> to vector<1x8x256xf32>
    tpu.vector_store %arg6[%c2_55, %c0_56, %c0_57], %269 {strides = array<i32>} : memref<4x8x256xf32, #tpu.memory_space<vmem>>, vector<1x8x256xf32>,
    %270 = vector.broadcast %33 : f32 to vector<8x256xf32>
    %271 = arith.mulf %86, %270 : vector<8x256xf32>
    %272 = vector.broadcast %73 : f32 to vector<8x256xf32>
    %273 = arith.addf %271, %272 : vector<8x256xf32>
    %274 = vector.broadcast %37 : f32 to vector<8x256xf32>
    %275 = arith.mulf %95, %274 : vector<8x256xf32>
    %276 = arith.addf %273, %275 : vector<8x256xf32>
    %277 = vector.broadcast %41 : f32 to vector<8x256xf32>
    %278 = arith.mulf %104, %277 : vector<8x256xf32>
    %279 = arith.addf %276, %278 : vector<8x256xf32>
    %280 = vector.broadcast %45 : f32 to vector<8x256xf32>
    %281 = arith.mulf %113, %280 : vector<8x256xf32>
    %282 = arith.addf %279, %281 : vector<8x256xf32>
    %283 = vector.broadcast %49 : f32 to vector<8x256xf32>
    %284 = arith.mulf %122, %283 : vector<8x256xf32>
    %285 = arith.addf %282, %284 : vector<8x256xf32>
    %286 = vector.broadcast %53 : f32 to vector<8x256xf32>
    %287 = arith.mulf %131, %286 : vector<8x256xf32>
    %288 = arith.addf %285, %287 : vector<8x256xf32>
    %289 = vector.broadcast %57 : f32 to vector<8x256xf32>
    %290 = arith.mulf %140, %289 : vector<8x256xf32>
    %291 = arith.addf %288, %290 : vector<8x256xf32>
    %292 = vector.broadcast %61 : f32 to vector<8x256xf32>
    %293 = arith.mulf %149, %292 : vector<8x256xf32>
    %294 = arith.addf %291, %293 : vector<8x256xf32>
    %295 = vector.broadcast %65 : f32 to vector<8x256xf32>
    %296 = arith.mulf %158, %295 : vector<8x256xf32>
    %297 = arith.addf %294, %296 : vector<8x256xf32>
    %298 = vector.broadcast %69 : f32 to vector<8x256xf32>
    %299 = arith.mulf %167, %298 : vector<8x256xf32>
    %300 = arith.addf %297, %299 : vector<8x256xf32>
    %c3_58 = arith.constant 3 : index
    %c0_59 = arith.constant 0 : index
    %c0_60 = arith.constant 0 : index
    %301 = vector.load %arg6[%c3_58, %c0_59, %c0_60] : memref<4x8x256xf32, #tpu.memory_space<vmem>>, vector<1x8x256xf32>
    %302 = vector.shape_cast %301 : vector<1x8x256xf32> to vector<8x256xf32>
    %303 = vector.shape_cast %300 : vector<8x256xf32> to vector<1x8x256xf32>
    tpu.vector_store %arg6[%c3_58, %c0_59, %c0_60], %303 {strides = array<i32>} : memref<4x8x256xf32, #tpu.memory_space<vmem>>, vector<1x8x256xf32>,
    return
  }
  func.func @transform_0(%arg0: i32) -> i32 {
    %c0_i32 = arith.constant 0 : i32
    %c0_i32_0 = arith.constant 0 : i32
    return %c0_i32 : i32
  }
  func.func @transform_1(%arg0: i32) -> i32 {
    %c0_i32 = arith.constant 0 : i32
    %c0_i32_0 = arith.constant 0 : i32
    return %c0_i32 : i32
  }
  func.func @transform_2(%arg0: i32) -> i32 {
    %c0_i32 = arith.constant 0 : i32
    %c0_i32_0 = arith.constant 0 : i32
    return %c0_i32 : i32
  }
  func.func @transform_3(%arg0: i32) -> i32 {
    %c0_i32 = arith.constant 0 : i32
    %c0_i32_0 = arith.constant 0 : i32
    return %c0_i32 : i32
  }
  func.func @transform_4(%arg0: i32) -> (i32, i32, i32) {
    %c0_i32 = arith.constant 0 : i32
    %c0_i32_0 = arith.constant 0 : i32
    %c0_i32_1 = arith.constant 0 : i32
    return %c0_i32, %arg0, %c0_i32_0 : i32, i32, i32
  }
  func.func @transform_5(%arg0: i32) -> (i32, i32, i32) {
    %c0_i32 = arith.constant 0 : i32
    %c0_i32_0 = arith.constant 0 : i32
    %c0_i32_1 = arith.constant 0 : i32
    return %c0_i32, %arg0, %c0_i32_0 : i32, i32, i32
  }
}

</mosaic_0001>

<llo_original>
// kernel: tpu_custom_call.1
$region0: #{tpu_custom_call.1}
  #allocation0 [shape = 'u32[]', space=smem, size = 0x4, offset = 0x4, fixed_abs, tag = 'smem constant byte address 0x4 - core index']
  #allocation1 [shape = 'u32[144,128]{1,0:T(1,128)}', space=vmem, size = 0x12000, scoped, tag = 'internal scratch']
  %s0 = inlined_call_operand.hbm [shape: f32[20], index: 0, kind: input, shape index: {}]
  %s1 = inlined_call_operand.vmem [shape: f32[10], index: 1, kind: input, shape index: {}]
  %s2 = inlined_call_operand.vmem [shape: f32[40], index: 2, kind: input, shape index: {}]
  %s3 = inlined_call_operand.vmem [shape: f32[4], index: 3, kind: input, shape index: {}]
  %s4 = inlined_call_operand.hbm [shape: f32[2,8,256], index: 4, kind: input, shape index: {}]
  %s5 = inlined_call_operand.hbm [shape: f32[4,8,256], index: 5, kind: output, shape index: {}]
  %s6 = sld [smem:[#allocation0]]
  $region50: #{tpu_custom_call.1} parent=0
    _
  %s8 = ssub.s32 1, %s6
  %s9 = scalar_select 0, %s8, %s6
  $region1: #{tpu_custom_call.1} parent=0
    #allocation2 [shape = 'u8[512]{0}', space=smem, size = 0x200, scoped, tag = 'input window, operand 0, single buffered']
    #allocation3 [shape = 's32[1]{0}', space=sflag, size = 0x4, scoped, tag = 'scoped memory for tpu_custom_call.1']
    #allocation4 [shape = 's32[1]{0}', space=sflag, size = 0x4, scoped, tag = 'scoped memory for tpu_custom_call.1']
    #allocation5 [shape = 's32[1]{0}', space=sflag, size = 0x4, scoped, tag = 'scoped memory for tpu_custom_call.1']
    #allocation6 [shape = 's32[1]{0}', space=sflag, size = 0x4, scoped, tag = 'scoped memory for tpu_custom_call.1']
    #allocation7 [shape = 'u8[512]{0}', space=smem, size = 0x200, scoped, tag = 'input window, operand 1, single buffered']
    #allocation8 [shape = 'u8[512]{0}', space=smem, size = 0x200, scoped, tag = 'input window, operand 2, single buffered']
    #allocation9 [shape = 's32[1]{0}', space=sflag, size = 0x4, scoped, tag = 'scoped memory for tpu_custom_call.1']
    #allocation10 [shape = 'u8[512]{0}', space=smem, size = 0x200, scoped, tag = 'input window, operand 3, single buffered']
    #allocation11 [shape = 'u8[16384]{0}', space=vmem, size = 0x4000, scoped, tag = 'input window, operand 4, single buffered']
    #allocation12 [shape = 'u8[32768]{0}', space=vmem, size = 0x8000, scoped, tag = 'output window, operand 0, single buffered']
    %10 = vsyncpa [#allocation5], 0
    %11 = vsyncpa [#allocation6], 0
    %12 = vsyncpa [#allocation9], 0
    %13 = vsyncpa [#allocation3], 0
    %14 = vsyncpa [#allocation4], 0
    // Predicated region
    $region2: #{tpu_custom_call.1} parent=1 // pred_check
      _
    $region3: #{tpu_custom_call.1} parent=1 // pred_check_branch
      %16 = sbr.rel (0) target = $region5
    $region4: #{tpu_custom_call.1} parent=1 // pred_region
      %s18 = ssub.s32 16, 16
      %19 = vsyncadd [#allocation5], %s18
      %22 = dma.hbm_to_smem %s0, 16, [#allocation2], [#allocation5]
    $region5: #{tpu_custom_call.1} parent=1 // pred_fallthru
      _
    // Predicated region
    $region6: #{tpu_custom_call.1} parent=1 // pred_check
      _
    $region7: #{tpu_custom_call.1} parent=1 // pred_check_branch
      %24 = sbr.rel (0) target = $region9
    $region8: #{tpu_custom_call.1} parent=1 // pred_region
      %s26 = ssub.s32 16, 16
      %27 = vsyncadd [#allocation6], %s26
      %s29 = sshll.u32 %s1, 4
      %s30 = int_to_ptr.vmem [resolvable:$true] %s29
      %32 = dma.vmem_to_smem %s30, 16, [#allocation7], [#allocation6]
    $region9: #{tpu_custom_call.1} parent=1 // pred_fallthru
      _
    // Predicated region
    $region10: #{tpu_custom_call.1} parent=1 // pred_check
      _
    $region11: #{tpu_custom_call.1} parent=1 // pred_check_branch
      %34 = sbr.rel (0) target = $region13
    $region12: #{tpu_custom_call.1} parent=1 // pred_region
      %s36 = ssub.s32 16, 16
      %37 = vsyncadd [#allocation9], %s36
      %s39 = sshll.u32 %s2, 4
      %s40 = int_to_ptr.vmem [resolvable:$true] %s39
      %42 = dma.vmem_to_smem %s40, 16, [#allocation8], [#allocation9]
    $region13: #{tpu_custom_call.1} parent=1 // pred_fallthru
      _
    // Predicated region
    $region14: #{tpu_custom_call.1} parent=1 // pred_check
      _
    $region15: #{tpu_custom_call.1} parent=1 // pred_check_branch
      %44 = sbr.rel (0) target = $region17
    $region16: #{tpu_custom_call.1} parent=1 // pred_region
      %s46 = ssub.s32 16, 16
      %47 = vsyncadd [#allocation9], %s46
      %s49 = sshll.u32 %s3, 4
      %s50 = int_to_ptr.vmem [resolvable:$true] %s49
      %52 = dma.vmem_to_smem %s50, 16, [#allocation10], [#allocation9]
    $region17: #{tpu_custom_call.1} parent=1 // pred_fallthru
      _
    // Predicated region
    $region18: #{tpu_custom_call.1} parent=1 // pred_check
      _
    $region19: #{tpu_custom_call.1} parent=1 // pred_check_branch
      %54 = sbr.rel (0) target = $region21
    $region20: #{tpu_custom_call.1} parent=1 // pred_region
      %s56 = ssub.s32 512, 512
      %57 = vsyncadd [#allocation3], %s56
      %s58 = sshll.u32 [#allocation11], 4
      %s59 = int_to_ptr.vmem [resolvable:$true] %s58
      %64 = dma.hbm_to_vmem [thread:$0]  %s4, 512, %s59, [#allocation3], 256, 256, 16
    $region21: #{tpu_custom_call.1} parent=1 // pred_fallthru
      _
    // Predicated region
    $region22: #{tpu_custom_call.1} parent=1 // pred_check
      _
    $region23: #{tpu_custom_call.1} parent=1 // pred_check_branch
      %66 = sbr.rel (0) target = $region25
    $region24: #{tpu_custom_call.1} parent=1 // pred_region
      %67 = dma.done [#allocation5], 16
    $region25: #{tpu_custom_call.1} parent=1 // pred_fallthru
      _
    // Predicated region
    $region26: #{tpu_custom_call.1} parent=1 // pred_check
      _
    $region27: #{tpu_custom_call.1} parent=1 // pred_check_branch
      %69 = sbr.rel (0) target = $region29
    $region28: #{tpu_custom_call.1} parent=1 // pred_region
      %70 = dma.done [#allocation6], 16
    $region29: #{tpu_custom_call.1} parent=1 // pred_fallthru
      _
    // Predicated region
    $region30: #{tpu_custom_call.1} parent=1 // pred_check
      _
    $region31: #{tpu_custom_call.1} parent=1 // pred_check_branch
      %72 = sbr.rel (0) target = $region33
    $region32: #{tpu_custom_call.1} parent=1 // pred_region
      %73 = dma.done [#allocation9], 16
    $region33: #{tpu_custom_call.1} parent=1 // pred_fallthru
      _
    // Predicated region
    $region34: #{tpu_custom_call.1} parent=1 // pred_check
      _
    $region35: #{tpu_custom_call.1} parent=1 // pred_check_branch
      %75 = sbr.rel (0) target = $region37
    $region36: #{tpu_custom_call.1} parent=1 // pred_region
      %76 = dma.done [#allocation9], 16
    $region37: #{tpu_custom_call.1} parent=1 // pred_fallthru
      _
    // Predicated region
    $region38: #{tpu_custom_call.1} parent=1 // pred_check
      _
    $region39: #{tpu_custom_call.1} parent=1 // pred_check_branch
      %78 = sbr.rel (0) target = $region41
    $region40: #{tpu_custom_call.1} parent=1 // pred_region
      %79 = dma.done [#allocation3], 512
    $region41: #{tpu_custom_call.1} parent=1 // pred_fallthru
      _
    %80 = sfence
    %s81 = sld [smem:[#allocation2]]
    %s82 = sld [smem:[#allocation2 + $0x1]]
    %s83 = sld [smem:[#allocation2 + $0x2]]
    %s84 = sld [smem:[#allocation2 + $0x3]]
    %s85 = sld [smem:[#allocation2 + $0x4]]
    %s86 = sld [smem:[#allocation2 + $0x5]]
    %s87 = sld [smem:[#allocation2 + $0x6]]
    %s88 = sld [smem:[#allocation2 + $0x7]]
    %s89 = sld [smem:[#allocation2 + $0x8]]
    %s90 = sld [smem:[#allocation2 + $0x9]]
    %s91 = sld [smem:[#allocation2 + $0xa]]
    %s92 = sld [smem:[#allocation2 + $0xb]]
    %s93 = sld [smem:[#allocation2 + $0xc]]
    %s94 = sld [smem:[#allocation2 + $0xd]]
    %s95 = sld [smem:[#allocation2 + $0xe]]
    %s96 = sld [smem:[#allocation2 + $0xf]]
    %s97 = sld [smem:[#allocation2 + $0x10]]
    %s98 = sld [smem:[#allocation2 + $0x11]]
    %s99 = sld [smem:[#allocation2 + $0x12]]
    %s100 = sld [smem:[#allocation2 + $0x13]]
    %s101 = sld [smem:[#allocation7]]
    %s102 = sld [smem:[#allocation7 + $0x1]]
    %s103 = sld [smem:[#allocation7 + $0x2]]
    %s104 = sld [smem:[#allocation7 + $0x3]]
    %s105 = sld [smem:[#allocation7 + $0x4]]
    %s106 = sld [smem:[#allocation7 + $0x5]]
    %s107 = sld [smem:[#allocation7 + $0x6]]
    %s108 = sld [smem:[#allocation7 + $0x7]]
    %s109 = sld [smem:[#allocation7 + $0x8]]
    %s110 = sld [smem:[#allocation7 + $0x9]]
    %s111 = sld [smem:[#allocation8]]
    %s112 = sld [smem:[#allocation8 + $0x1]]
    %s113 = sld [smem:[#allocation8 + $0x2]]
    %s114 = sld [smem:[#allocation8 + $0x3]]
    %s115 = sld [smem:[#allocation8 + $0x4]]
    %s116 = sld [smem:[#allocation8 + $0x5]]
    %s117 = sld [smem:[#allocation8 + $0x6]]
    %s118 = sld [smem:[#allocation8 + $0x7]]
    %s119 = sld [smem:[#allocation8 + $0x8]]
    %s120 = sld [smem:[#allocation8 + $0x9]]
    %s121 = sld [smem:[#allocation8 + $0xa]]
    %s122 = sld [smem:[#allocation8 + $0xb]]
    %s123 = sld [smem:[#allocation8 + $0xc]]
    %s124 = sld [smem:[#allocation8 + $0xd]]
    %s125 = sld [smem:[#allocation8 + $0xe]]
    %s126 = sld [smem:[#allocation8 + $0xf]]
    %s127 = sld [smem:[#allocation8 + $0x10]]
    %s128 = sld [smem:[#allocation8 + $0x11]]
    %s129 = sld [smem:[#allocation8 + $0x12]]
    %s130 = sld [smem:[#allocation8 + $0x13]]
    %s131 = sld [smem:[#allocation8 + $0x14]]
    %s132 = sld [smem:[#allocation8 + $0x15]]
    %s133 = sld [smem:[#allocation8 + $0x16]]
    %s134 = sld [smem:[#allocation8 + $0x17]]
    %s135 = sld [smem:[#allocation8 + $0x18]]
    %s136 = sld [smem:[#allocation8 + $0x19]]
    %s137 = sld [smem:[#allocation8 + $0x1a]]
    %s138 = sld [smem:[#allocation8 + $0x1b]]
    %s139 = sld [smem:[#allocation8 + $0x1c]]
    %s140 = sld [smem:[#allocation8 + $0x1d]]
    %s141 = sld [smem:[#allocation8 + $0x1e]]
    %s142 = sld [smem:[#allocation8 + $0x1f]]
    %s143 = sld [smem:[#allocation8 + $0x20]]
    %s144 = sld [smem:[#allocation8 + $0x21]]
    %s145 = sld [smem:[#allocation8 + $0x22]]
    %s146 = sld [smem:[#allocation8 + $0x23]]
    %s147 = sld [smem:[#allocation8 + $0x24]]
    %s148 = sld [smem:[#allocation8 + $0x25]]
    %s149 = sld [smem:[#allocation8 + $0x26]]
    %s150 = sld [smem:[#allocation8 + $0x27]]
    %s151 = sld [smem:[#allocation10]]
    %s152 = sld [smem:[#allocation10 + $0x1]]
    %s153 = sld [smem:[#allocation10 + $0x2]]
    %s154 = sld [smem:[#allocation10 + $0x3]]
    %v155 = vld [vmem:[#allocation11] sm:$0xff]
    %v156 = vld [vmem:[#allocation11 + $0x8] sm:$0xff]
    %s157 = scalar_lea.vmem [#allocation11], 16
    %v158 = vld [vmem:[%s157] sm:$0xff]
    %v159 = vld [vmem:[%s157 + $0x8] sm:$0xff]
    %v160 = vstv %s81
    %v161 = vmul.f32 %v160, %v155
    %v162 = vmul.f32 %v160, %v156
    %v163 = vstv %s91
    %v164 = vmul.f32 %v163, %v158
    %v165 = vmul.f32 %v163, %v159
    %v166 = vadd.f32 %v161, %v164
    %v167 = vadd.f32 %v162, %v165
    %v168 = vstv %s101
    %v169 = vadd.f32 %v166, %v168
    %v170 = vadd.f32 %v167, %v168
    %v171 = vmax.f32 %v169, 0.0
    %v172 = vmax.f32 %v170, 0.0
    %v173 = vstv %s82
    %v174 = vmul.f32 %v173, %v155
    %v175 = vmul.f32 %v173, %v156
    %v176 = vstv %s92
    %v177 = vmul.f32 %v176, %v158
    %v178 = vmul.f32 %v176, %v159
    %v179 = vadd.f32 %v174, %v177
    %v180 = vadd.f32 %v175, %v178
    %v181 = vstv %s102
    %v182 = vadd.f32 %v179, %v181
    %v183 = vadd.f32 %v180, %v181
    %v184 = vmax.f32 %v182, 0.0
    %v185 = vmax.f32 %v183, 0.0
    %v186 = vstv %s83
    %v187 = vmul.f32 %v186, %v155
    %v188 = vmul.f32 %v186, %v156
    %v189 = vstv %s93
    %v190 = vmul.f32 %v189, %v158
    %v191 = vmul.f32 %v189, %v159
    %v192 = vadd.f32 %v187, %v190
    %v193 = vadd.f32 %v188, %v191
    %v194 = vstv %s103
    %v195 = vadd.f32 %v192, %v194
    %v196 = vadd.f32 %v193, %v194
    %v197 = vmax.f32 %v195, 0.0
    %v198 = vmax.f32 %v196, 0.0
    %v199 = vstv %s84
    %v200 = vmul.f32 %v199, %v155
    %v201 = vmul.f32 %v199, %v156
    %v202 = vstv %s94
    %v203 = vmul.f32 %v202, %v158
    %v204 = vmul.f32 %v202, %v159
    %v205 = vadd.f32 %v200, %v203
    %v206 = vadd.f32 %v201, %v204
    %v207 = vstv %s104
    %v208 = vadd.f32 %v205, %v207
    %v209 = vadd.f32 %v206, %v207
    %v210 = vmax.f32 %v208, 0.0
    %v211 = vmax.f32 %v209, 0.0
    %v212 = vstv %s85
    %v213 = vmul.f32 %v212, %v155
    %v214 = vmul.f32 %v212, %v156
    %v215 = vstv %s95
    %v216 = vmul.f32 %v215, %v158
    %v217 = vmul.f32 %v215, %v159
    %v218 = vadd.f32 %v213, %v216
    %v219 = vadd.f32 %v214, %v217
    %v220 = vstv %s105
    %v221 = vadd.f32 %v218, %v220
    %v222 = vadd.f32 %v219, %v220
    %v223 = vmax.f32 %v221, 0.0
    %v224 = vmax.f32 %v222, 0.0
    %v225 = vstv %s86
    %v226 = vmul.f32 %v225, %v155
    %v227 = vmul.f32 %v225, %v156
    %v228 = vstv %s96
    %v229 = vmul.f32 %v228, %v158
    %v230 = vmul.f32 %v228, %v159
    %v231 = vadd.f32 %v226, %v229
    %v232 = vadd.f32 %v227, %v230
    %v233 = vstv %s106
    %v234 = vadd.f32 %v231, %v233
    %v235 = vadd.f32 %v232, %v233
    %v236 = vmax.f32 %v234, 0.0
    %v237 = vmax.f32 %v235, 0.0
    %v238 = vstv %s87
    %v239 = vmul.f32 %v238, %v155
    %v240 = vmul.f32 %v238, %v156
    %v241 = vstv %s97
    %v242 = vmul.f32 %v241, %v158
    %v243 = vmul.f32 %v241, %v159
    %v244 = vadd.f32 %v239, %v242
    %v245 = vadd.f32 %v240, %v243
    %v246 = vstv %s107
    %v247 = vadd.f32 %v244, %v246
    %v248 = vadd.f32 %v245, %v246
    %v249 = vmax.f32 %v247, 0.0
    %v250 = vmax.f32 %v248, 0.0
    %v251 = vstv %s88
    %v252 = vmul.f32 %v251, %v155
    %v253 = vmul.f32 %v251, %v156
    %v254 = vstv %s98
    %v255 = vmul.f32 %v254, %v158
    %v256 = vmul.f32 %v254, %v159
    %v257 = vadd.f32 %v252, %v255
    %v258 = vadd.f32 %v253, %v256
    %v259 = vstv %s108
    %v260 = vadd.f32 %v257, %v259
    %v261 = vadd.f32 %v258, %v259
    %v262 = vmax.f32 %v260, 0.0
    %v263 = vmax.f32 %v261, 0.0
    %v264 = vstv %s89
    %v265 = vmul.f32 %v264, %v155
    %v266 = vmul.f32 %v264, %v156
    %v267 = vstv %s99
    %v268 = vmul.f32 %v267, %v158
    %v269 = vmul.f32 %v267, %v159
    %v270 = vadd.f32 %v265, %v268
    %v271 = vadd.f32 %v266, %v269
    %v272 = vstv %s109
    %v273 = vadd.f32 %v270, %v272
    %v274 = vadd.f32 %v271, %v272
    %v275 = vmax.f32 %v273, 0.0
    %v276 = vmax.f32 %v274, 0.0
    %v277 = vstv %s90
    %v278 = vmul.f32 %v277, %v155
    %v279 = vmul.f32 %v277, %v156
    %v280 = vstv %s100
    %v281 = vmul.f32 %v280, %v158
    %v282 = vmul.f32 %v280, %v159
    %v283 = vadd.f32 %v278, %v281
    %v284 = vadd.f32 %v279, %v282
    %v285 = vstv %s110
    %v286 = vadd.f32 %v283, %v285
    %v287 = vadd.f32 %v284, %v285
    %v288 = vmax.f32 %v286, 0.0
    %v289 = vmax.f32 %v287, 0.0
    %v290 = vstv %s111
    %v291 = vmul.f32 %v171, %v290
    %v292 = vmul.f32 %v172, %v290
    %v293 = vstv %s151
    %v294 = vadd.f32 %v291, %v293
    %v295 = vadd.f32 %v292, %v293
    %v296 = vstv %s115
    %v297 = vmul.f32 %v184, %v296
    %v298 = vmul.f32 %v185, %v296
    %v299 = vadd.f32 %v294, %v297
    %v300 = vadd.f32 %v295, %v298
    %v301 = vstv %s119
    %v302 = vmul.f32 %v197, %v301
    %v303 = vmul.f32 %v198, %v301
    %v304 = vadd.f32 %v299, %v302
    %v305 = vadd.f32 %v300, %v303
    %v306 = vstv %s123
    %v307 = vmul.f32 %v210, %v306
    %v308 = vmul.f32 %v211, %v306
    %v309 = vadd.f32 %v304, %v307
    %v310 = vadd.f32 %v305, %v308
    %v311 = vstv %s127
    %v312 = vmul.f32 %v223, %v311
    %v313 = vmul.f32 %v224, %v311
    %v314 = vadd.f32 %v309, %v312
    %v315 = vadd.f32 %v310, %v313
    %v316 = vstv %s131
    %v317 = vmul.f32 %v236, %v316
    %v318 = vmul.f32 %v237, %v316
    %v319 = vadd.f32 %v314, %v317
    %v320 = vadd.f32 %v315, %v318
    %v321 = vstv %s135
    %v322 = vmul.f32 %v249, %v321
    %v323 = vmul.f32 %v250, %v321
    %v324 = vadd.f32 %v319, %v322
    %v325 = vadd.f32 %v320, %v323
    %v326 = vstv %s139
    %v327 = vmul.f32 %v262, %v326
    %v328 = vmul.f32 %v263, %v326
    %v329 = vadd.f32 %v324, %v327
    %v330 = vadd.f32 %v325, %v328
    %v331 = vstv %s143
    %v332 = vmul.f32 %v275, %v331
    %v333 = vmul.f32 %v276, %v331
    %v334 = vadd.f32 %v329, %v332
    %v335 = vadd.f32 %v330, %v333
    %v336 = vstv %s147
    %v337 = vmul.f32 %v288, %v336
    %v338 = vmul.f32 %v289, %v336
    %v339 = vadd.f32 %v334, %v337
    %v340 = vadd.f32 %v335, %v338
    %341 = vst [vmem:[#allocation12] sm:$0xff] %v339
    %342 = vst [vmem:[#allocation12 + $0x8] sm:$0xff] %v340
    %v343 = vstv %s112
    %v344 = vmul.f32 %v171, %v343
    %v345 = vmul.f32 %v172, %v343
    %v346 = vstv %s152
    %v347 = vadd.f32 %v344, %v346
    %v348 = vadd.f32 %v345, %v346
    %v349 = vstv %s116
    %v350 = vmul.f32 %v184, %v349
    %v351 = vmul.f32 %v185, %v349
    %v352 = vadd.f32 %v347, %v350
    %v353 = vadd.f32 %v348, %v351
    %v354 = vstv %s120
    %v355 = vmul.f32 %v197, %v354
    %v356 = vmul.f32 %v198, %v354
    %v357 = vadd.f32 %v352, %v355
    %v358 = vadd.f32 %v353, %v356
    %v359 = vstv %s124
    %v360 = vmul.f32 %v210, %v359
    %v361 = vmul.f32 %v211, %v359
    %v362 = vadd.f32 %v357, %v360
    %v363 = vadd.f32 %v358, %v361
    %v364 = vstv %s128
    %v365 = vmul.f32 %v223, %v364
    %v366 = vmul.f32 %v224, %v364
    %v367 = vadd.f32 %v362, %v365
    %v368 = vadd.f32 %v363, %v366
    %v369 = vstv %s132
    %v370 = vmul.f32 %v236, %v369
    %v371 = vmul.f32 %v237, %v369
    %v372 = vadd.f32 %v367, %v370
    %v373 = vadd.f32 %v368, %v371
    %v374 = vstv %s136
    %v375 = vmul.f32 %v249, %v374
    %v376 = vmul.f32 %v250, %v374
    %v377 = vadd.f32 %v372, %v375
    %v378 = vadd.f32 %v373, %v376
    %v379 = vstv %s140
    %v380 = vmul.f32 %v262, %v379
    %v381 = vmul.f32 %v263, %v379
    %v382 = vadd.f32 %v377, %v380
    %v383 = vadd.f32 %v378, %v381
    %v384 = vstv %s144
    %v385 = vmul.f32 %v275, %v384
    %v386 = vmul.f32 %v276, %v384
    %v387 = vadd.f32 %v382, %v385
    %v388 = vadd.f32 %v383, %v386
    %v389 = vstv %s148
    %v390 = vmul.f32 %v288, %v389
    %v391 = vmul.f32 %v289, %v389
    %v392 = vadd.f32 %v387, %v390
    %v393 = vadd.f32 %v388, %v391
    %s394 = scalar_lea.vmem [#allocation12], 16
    %395 = vst [vmem:[%s394] sm:$0xff] %v392
    %396 = vst [vmem:[%s394 + $0x8] sm:$0xff] %v393
    %v397 = vstv %s113
    %v398 = vmul.f32 %v171, %v397
    %v399 = vmul.f32 %v172, %v397
    %v400 = vstv %s153
    %v401 = vadd.f32 %v398, %v400
    %v402 = vadd.f32 %v399, %v400
    %v403 = vstv %s117
    %v404 = vmul.f32 %v184, %v403
    %v405 = vmul.f32 %v185, %v403
    %v406 = vadd.f32 %v401, %v404
    %v407 = vadd.f32 %v402, %v405
    %v408 = vstv %s121
    %v409 = vmul.f32 %v197, %v408
    %v410 = vmul.f32 %v198, %v408
    %v411 = vadd.f32 %v406, %v409
    %v412 = vadd.f32 %v407, %v410
    %v413 = vstv %s125
    %v414 = vmul.f32 %v210, %v413
    %v415 = vmul.f32 %v211, %v413
    %v416 = vadd.f32 %v411, %v414
    %v417 = vadd.f32 %v412, %v415
    %v418 = vstv %s129
    %v419 = vmul.f32 %v223, %v418
    %v420 = vmul.f32 %v224, %v418
    %v421 = vadd.f32 %v416, %v419
    %v422 = vadd.f32 %v417, %v420
    %v423 = vstv %s133
    %v424 = vmul.f32 %v236, %v423
    %v425 = vmul.f32 %v237, %v423
    %v426 = vadd.f32 %v421, %v424
    %v427 = vadd.f32 %v422, %v425
    %v428 = vstv %s137
    %v429 = vmul.f32 %v249, %v428
    %v430 = vmul.f32 %v250, %v428
    %v431 = vadd.f32 %v426, %v429
    %v432 = vadd.f32 %v427, %v430
    %v433 = vstv %s141
    %v434 = vmul.f32 %v262, %v433
    %v435 = vmul.f32 %v263, %v433
    %v436 = vadd.f32 %v431, %v434
    %v437 = vadd.f32 %v432, %v435
    %v438 = vstv %s145
    %v439 = vmul.f32 %v275, %v438
    %v440 = vmul.f32 %v276, %v438
    %v441 = vadd.f32 %v436, %v439
    %v442 = vadd.f32 %v437, %v440
    %v443 = vstv %s149
    %v444 = vmul.f32 %v288, %v443
    %v445 = vmul.f32 %v289, %v443
    %v446 = vadd.f32 %v441, %v444
    %v447 = vadd.f32 %v442, %v445
    %s448 = scalar_lea.vmem [#allocation12], 32
    %449 = vst [vmem:[%s448] sm:$0xff] %v446
    %450 = vst [vmem:[%s448 + $0x8] sm:$0xff] %v447
    %v451 = vstv %s114
    %v452 = vmul.f32 %v171, %v451
    %v453 = vmul.f32 %v172, %v451
    %v454 = vstv %s154
    %v455 = vadd.f32 %v452, %v454
    %v456 = vadd.f32 %v453, %v454
    %v457 = vstv %s118
    %v458 = vmul.f32 %v184, %v457
    %v459 = vmul.f32 %v185, %v457
    %v460 = vadd.f32 %v455, %v458
    %v461 = vadd.f32 %v456, %v459
    %v462 = vstv %s122
    %v463 = vmul.f32 %v197, %v462
    %v464 = vmul.f32 %v198, %v462
    %v465 = vadd.f32 %v460, %v463
    %v466 = vadd.f32 %v461, %v464
    %v467 = vstv %s126
    %v468 = vmul.f32 %v210, %v467
    %v469 = vmul.f32 %v211, %v467
    %v470 = vadd.f32 %v465, %v468
    %v471 = vadd.f32 %v466, %v469
    %v472 = vstv %s130
    %v473 = vmul.f32 %v223, %v472
    %v474 = vmul.f32 %v224, %v472
    %v475 = vadd.f32 %v470, %v473
    %v476 = vadd.f32 %v471, %v474
    %v477 = vstv %s134
    %v478 = vmul.f32 %v236, %v477
    %v479 = vmul.f32 %v237, %v477
    %v480 = vadd.f32 %v475, %v478
    %v481 = vadd.f32 %v476, %v479
    %v482 = vstv %s138
    %v483 = vmul.f32 %v249, %v482
    %v484 = vmul.f32 %v250, %v482
    %v485 = vadd.f32 %v480, %v483
    %v486 = vadd.f32 %v481, %v484
    %v487 = vstv %s142
    %v488 = vmul.f32 %v262, %v487
    %v489 = vmul.f32 %v263, %v487
    %v490 = vadd.f32 %v485, %v488
    %v491 = vadd.f32 %v486, %v489
    %v492 = vstv %s146
    %v493 = vmul.f32 %v275, %v492
    %v494 = vmul.f32 %v276, %v492
    %v495 = vadd.f32 %v490, %v493
    %v496 = vadd.f32 %v491, %v494
    %v497 = vstv %s150
    %v498 = vmul.f32 %v288, %v497
    %v499 = vmul.f32 %v289, %v497
    %v500 = vadd.f32 %v495, %v498
    %v501 = vadd.f32 %v496, %v499
    %s502 = scalar_lea.vmem [#allocation12], 48
    %503 = vst [vmem:[%s502] sm:$0xff] %v500
    %504 = vst [vmem:[%s502 + $0x8] sm:$0xff] %v501
    // Predicated region
    $region42: #{tpu_custom_call.1} parent=1 // pred_check
      _
    $region43: #{tpu_custom_call.1} parent=1 // pred_check_branch
      %506 = sbr.rel (0) target = $region45
    $region44: #{tpu_custom_call.1} parent=1 // pred_region
      %s508 = ssub.s32 1024, 1024
      %509 = vsyncadd [#allocation4], %s508
      %s510 = sshll.u32 [#allocation12], 4
      %s511 = int_to_ptr.vmem [resolvable:$true] %s510
      %516 = dma.vmem_to_hbm [thread:$0]  %s511, 1024, %s5, [#allocation4], 256, 256, 16
    $region45: #{tpu_custom_call.1} parent=1 // pred_fallthru
      _
    // Predicated region
    $region46: #{tpu_custom_call.1} parent=1 // pred_check
      _
    $region47: #{tpu_custom_call.1} parent=1 // pred_check_branch
      %518 = sbr.rel (0) target = $region49
    $region48: #{tpu_custom_call.1} parent=1 // pred_region
      %519 = dma.done [#allocation4], 1024
    $region49: #{tpu_custom_call.1} parent=1 // pred_fallthru
      _
    %520 = vsyncpa [#allocation3], 1
    %521 = vsyncpa [#allocation4], 1
    %522 = vsyncpa [#allocation5], 1
    %523 = vsyncpa [#allocation6], 1
    %524 = vsyncpa [#allocation9], 1

</llo_original>
